<compile_context>
chip_gen: v5e
topology: v5e:2x2
jax: 0.10.0
libtpu: 0.0.40
codegen_flags: <defaults>
</compile_context>

<pallas_src>
import functools

import jax
import jax.numpy as jnp
from jax.experimental import pallas as pl
from jax.experimental.pallas import tpu as pltpu


def _round_up(x, m):
    return ((x + m - 1) // m) * m


def _choose_tile(dim, target, granule):
    """Largest multiple of `granule` that divides `dim` and is <= target.

    Falls back to `dim` itself (full axis) if no such divisor exists.
    """
    if dim <= target:
        return dim
    t = (target // granule) * granule
    while t >= granule:
        if dim % t == 0:
            return t
        t -= granule
    return dim


def _swiglu_mlp_kernel(x_ref, w1_ref, w3_ref, w2_ref, o_ref, acc_ref):
    """One (token-tile, ffn-tile) step of the SwiGLU MLP.

    x_ref  : (tm, H)  token tile, native dtype (fed straight to the MXU)
    w1_ref : (H, tf)  gate projection tile (input-major)
    w3_ref : (H, tf)  up   projection tile (input-major)
    w2_ref : (tf, H)  down projection tile (input-major)
    o_ref  : (tm, H)  output tile
    acc_ref: (tm, H)  f32 accumulator, resident across the F (reduction) axis
    """
    f = pl.program_id(1)

    @pl.when(f == 0)
    def _():
        acc_ref[...] = jnp.zeros_like(acc_ref)

    x = x_ref[...]  # native dtype; MXU accumulates in f32
    gate = jnp.dot(x, w1_ref[...], preferred_element_type=jnp.float32)
    up = jnp.dot(x, w3_ref[...], preferred_element_type=jnp.float32)

    # SiLU(gate) * up in f32 (sigmoid on the EUP).
    hidden = jax.nn.silu(gate) * up

    # Down projection: cast hidden back to the weight dtype (no-op for f32,
    # bf16 for bf16 weights -> full-rate MXU), accumulate in f32 scratch.
    acc_ref[...] += jnp.dot(hidden.astype(w2_ref.dtype), w2_ref[...],
                            preferred_element_type=jnp.float32)

    @pl.when(f == pl.num_programs(1) - 1)
    def _():
        o_ref[...] = acc_ref[...].astype(o_ref.dtype)


def prepare_expert_weights(w1, w2, w3):
    """One-time conversion from torch nn.Linear layout (out_dim, in_dim) to the
    input-major layout the kernel consumes. Call this at weight-load time, NOT
    per forward call (avoids per-call HBM transpose traffic).

    w1, w3: (F, H) -> (H, F);   w2: (H, F) -> (F, H)
    """
    return jnp.asarray(w1).T, jnp.asarray(w2).T, jnp.asarray(w3).T


@functools.partial(jax.jit, static_argnames=("block_tokens", "block_ffn"))
def jiutian_top2_mlp(hidden_states, w1_t, w2_t, w3_t, *,
                     block_tokens=None, block_ffn=None):
    """SwiGLU expert MLP:  w2( silu(w1(x)) * w3(x) ).

    hidden_states: (..., H)
    w1_t, w3_t   : (H, F)  input-major (pre-transposed via prepare_expert_weights)
    w2_t         : (F, H)  input-major
    """
    orig_shape = hidden_states.shape
    H = orig_shape[-1]
    x = hidden_states.reshape(-1, H)
    T = x.shape[0]
    F_dim = w1_t.shape[1]
    dtype = hidden_states.dtype
    itemsize = jnp.dtype(dtype).itemsize

    # Sublane granule: 8 rows of 32-bit; packed dtypes need proportionally more.
    granule = 8 * max(1, 4 // itemsize)

    # Token tile: ~256 fills the MXU M dim; for real T this gives many parallel
    # grid steps (pipelining + both TensorCores on v7x). Tiny T -> one tile.
    if block_tokens is None:
        tm = min(256, _round_up(T, granule))
    else:
        tm = block_tokens
    # FFN tile: multiple of 128 (v5e MXU width); 512 target suits v6e/v7x 256x256.
    if block_ffn is None:
        tf = _choose_tile(F_dim, 512, 128)
    else:
        tf = block_ffn

    # Pad tokens so the grid divides evenly (padded rows are zeros, sliced off).
    T_pad = _round_up(T, tm)
    if T_pad != T:
        x = jnp.pad(x, ((0, T_pad - T), (0, 0)))

    grid = (T_pad // tm, F_dim // tf)

    # VMEM budget: double-buffered x/out tiles + streamed weight tiles + f32 acc.
    vmem_bytes = (2 * 2 * tm * H * itemsize                # x + out, 2 buffers each
                  + 2 * (2 * H * tf + tf * H) * itemsize   # w1, w3, w2 tiles, 2 buffers
                  + tm * H * 4)                            # f32 accumulator
    vmem_limit = int(min(max(2 * vmem_bytes, 32 << 20), 64 << 20))

    cost = pl.CostEstimate(
        flops=6 * T_pad * H * F_dim,                       # three T x H x F matmuls
        transcendentals=T_pad * F_dim,                     # sigmoid in SiLU
        bytes_accessed=(2 * T_pad * H + 3 * H * F_dim) * itemsize,
    )

    out = pl.pallas_call(
        _swiglu_mlp_kernel,
        out_shape=jax.ShapeDtypeStruct((T_pad, H), dtype),
        grid_spec=pltpu.PrefetchScalarGridSpec(
            num_scalar_prefetch=0,
            grid=grid,
            in_specs=[
                pl.BlockSpec((tm, H), lambda i, f: (i, 0)),      # x tile (resident over f)
                pl.BlockSpec((H, tf), lambda i, f: (0, f)),      # w1^T tile (streamed over f)
                pl.BlockSpec((H, tf), lambda i, f: (0, f)),      # w3^T tile (streamed over f)
                pl.BlockSpec((tf, H), lambda i, f: (f, 0)),      # w2^T tile (streamed over f)
            ],
            out_specs=pl.BlockSpec((tm, H), lambda i, f: (i, 0)),
            scratch_shapes=[pltpu.VMEM((tm, H), jnp.float32)],
        ),
        compiler_params=pltpu.CompilerParams(
            dimension_semantics=("parallel", "arbitrary"),
            vmem_limit_bytes=vmem_limit,
        ),
        cost_estimate=cost,
    )(x, w1_t, w3_t, w2_t)

    if T_pad != T:
        out = out[:T]
    return out.reshape(orig_shape)


def _reference(hidden_states, w1, w2, w3):
    x = hidden_states.astype(jnp.float32)
    gate = x @ w1.T.astype(jnp.float32)
    up = x @ w3.T.astype(jnp.float32)
    h = jax.nn.silu(gate) * up
    return (h @ w2.T.astype(jnp.float32)).astype(hidden_states.dtype)


if __name__ == "__main__":
    # Small config consistent with the module:
    #   hidden_size (H) = 128, intermediate_size (ffn_dim, F) = 256,
    #   hidden_act = "silu", is_sub_expert = False.
    batch, seq, H, F_dim = 2, 4, 128, 256

    key = jax.random.PRNGKey(0)
    k_x, k_w1, k_w2, k_w3 = jax.random.split(key, 4)

    hidden_states = jax.random.normal(k_x, (batch, seq, H), dtype=jnp.float32)
    # torch nn.Linear weight shapes: (out_features, in_features).
    w1 = jax.random.normal(k_w1, (F_dim, H), dtype=jnp.float32) * 0.02  # w1.weight
    w2 = jax.random.normal(k_w2, (H, F_dim), dtype=jnp.float32) * 0.02  # w2.weight
    w3 = jax.random.normal(k_w3, (F_dim, H), dtype=jnp.float32) * 0.02  # w3.weight

    # One-time weight layout conversion (outside the per-call jit path).
    w1_t, w2_t, w3_t = prepare_expert_weights(w1, w2, w3)

    out = jiutian_top2_mlp(hidden_states, w1_t, w2_t, w3_t)
    out = jax.block_until_ready(out)

    ref = _reference(hidden_states, w1, w2, w3)
    assert out.shape == hidden_states.shape
    assert jnp.allclose(out, ref, atol=1e-3, rtol=1e-3), "mismatch vs reference"

    print("KERNEL_OK")
</pallas_src>

<mosaic_0001>
module attributes {stable_mosaic.version = 11 : i64} {
  func.func @_swiglu_mlp_kernel(%arg0: i32, %arg1: i32, %arg2: memref<8x128xf32, #tpu.memory_space<vmem>>, %arg3: memref<128x256xf32, #tpu.memory_space<vmem>>, %arg4: memref<128x256xf32, #tpu.memory_space<vmem>>, %arg5: memref<256x128xf32, #tpu.memory_space<vmem>>, %arg6: memref<8x128xf32, #tpu.memory_space<vmem>>, %arg7: memref<8x128xf32, #tpu.memory_space<vmem>>) attributes {dimension_semantics = [#tpu.dimension_semantics<parallel>, #tpu.dimension_semantics<arbitrary>], iteration_bounds = array<i64: 1, 1>, scalar_prefetch = 0 : i64, scratch_operands = 1 : i64, tpu.core_type = #tpu.core_type<tc>, window_params = [{transform_indices = @transform_0, window_bounds = array<i64: 8, 128>}, {transform_indices = @transform_1, window_bounds = array<i64: 128, 256>}, {transform_indices = @transform_2, window_bounds = array<i64: 128, 256>}, {transform_indices = @transform_3, window_bounds = array<i64: 256, 128>}, {transform_indices = @transform_4, window_bounds = array<i64: 8, 128>}]} {
    %c0_i32 = arith.constant 0 : i32
    %0 = arith.cmpi eq, %arg1, %c0_i32 : i32
    %1 = arith.extui %0 : i1 to i32
    %c0_i32_0 = arith.constant 0 : i32
    %2 = arith.cmpi ne, %1, %c0_i32_0 : i32
    scf.if %2 {
      %cst_17 = arith.constant 0.000000e+00 : f32
      %23 = vector.broadcast %cst_17 : f32 to vector<8x128xf32>
      %c0_18 = arith.constant 0 : index
      %c0_19 = arith.constant 0 : index
      %24 = vector.load %arg7[%c0_18, %c0_19] : memref<8x128xf32, #tpu.memory_space<vmem>>, vector<8x128xf32>
      tpu.vector_store %arg7[%c0_18, %c0_19], %23 {strides = array<i32>} : memref<8x128xf32, #tpu.memory_space<vmem>>, vector<8x128xf32>,
    } else {
    }
    %c0 = arith.constant 0 : index
    %c0_1 = arith.constant 0 : index
    %3 = vector.load %arg2[%c0, %c0_1] : memref<8x128xf32, #tpu.memory_space<vmem>>, vector<8x128xf32>
    %c0_2 = arith.constant 0 : index
    %c0_3 = arith.constant 0 : index
    %4 = vector.load %arg3[%c0_2, %c0_3] : memref<128x256xf32, #tpu.memory_space<vmem>>, vector<128x256xf32>
    %cst = arith.constant dense<0.000000e+00> : vector<8x256xf32>
    %5 = tpu.matmul %3, %4, %cst {dimension_numbers = #tpu.dot_dimension_numbers<[1], [0], [0], [1], [0, 0, 1, 1], [], []>} : vector<8x128xf32>, vector<128x256xf32>, vector<8x256xf32> -> vector<8x256xf32>
    %c0_4 = arith.constant 0 : index
    %c0_5 = arith.constant 0 : index
    %6 = vector.load %arg4[%c0_4, %c0_5] : memref<128x256xf32, #tpu.memory_space<vmem>>, vector<128x256xf32>
    %cst_6 = arith.constant dense<0.000000e+00> : vector<8x256xf32>
    %7 = tpu.matmul %3, %6, %cst_6 {dimension_numbers = #tpu.dot_dimension_numbers<[1], [0], [0], [1], [0, 0, 1, 1], [], []>} : vector<8x128xf32>, vector<128x256xf32>, vector<8x256xf32> -> vector<8x256xf32>
    %8 = arith.negf %5 : vector<8x256xf32>
    %9 = math.exp %8 : vector<8x256xf32>
    %cst_7 = arith.constant 1.000000e+00 : f32
    %10 = vector.broadcast %cst_7 : f32 to vector<8x256xf32>
    %11 = arith.addf %10, %9 : vector<8x256xf32>
    %12 = arith.divf %10, %11 : vector<8x256xf32>
    %13 = arith.mulf %5, %12 : vector<8x256xf32>
    %14 = arith.mulf %13, %7 : vector<8x256xf32>
    %c0_8 = arith.constant 0 : index
    %c0_9 = arith.constant 0 : index
    %15 = vector.load %arg7[%c0_8, %c0_9] : memref<8x128xf32, #tpu.memory_space<vmem>>, vector<8x128xf32>
    %c0_10 = arith.constant 0 : index
    %c0_11 = arith.constant 0 : index
    %16 = vector.load %arg5[%c0_10, %c0_11] : memref<256x128xf32, #tpu.memory_space<vmem>>, vector<256x128xf32>
    %cst_12 = arith.constant dense<0.000000e+00> : vector<8x128xf32>
    %17 = tpu.matmul %14, %16, %cst_12 {dimension_numbers = #tpu.dot_dimension_numbers<[1], [0], [0], [1], [0, 0, 1, 1], [], []>} : vector<8x256xf32>, vector<256x128xf32>, vector<8x128xf32> -> vector<8x128xf32>
    %18 = arith.addf %15, %17 : vector<8x128xf32>
    %c0_13 = arith.constant 0 : index
    %c0_14 = arith.constant 0 : index
    %19 = vector.load %arg7[%c0_13, %c0_14] : memref<8x128xf32, #tpu.memory_space<vmem>>, vector<8x128xf32>
    tpu.vector_store %arg7[%c0_13, %c0_14], %18 {strides = array<i32>} : memref<8x128xf32, #tpu.memory_space<vmem>>, vector<8x128xf32>,
    %c0_i32_15 = arith.constant 0 : i32
    %20 = arith.cmpi eq, %arg1, %c0_i32_15 : i32
    %21 = arith.extui %20 : i1 to i32
    %c0_i32_16 = arith.constant 0 : i32
    %22 = arith.cmpi ne, %21, %c0_i32_16 : i32
    scf.if %22 {
      %c0_17 = arith.constant 0 : index
      %c0_18 = arith.constant 0 : index
      %23 = vector.load %arg7[%c0_17, %c0_18] : memref<8x128xf32, #tpu.memory_space<vmem>>, vector<8x128xf32>
      %c0_19 = arith.constant 0 : index
      %c0_20 = arith.constant 0 : index
      %24 = vector.load %arg6[%c0_19, %c0_20] : memref<8x128xf32, #tpu.memory_space<vmem>>, vector<8x128xf32>
      tpu.vector_store %arg6[%c0_19, %c0_20], %23 {strides = array<i32>} : memref<8x128xf32, #tpu.memory_space<vmem>>, vector<8x128xf32>,
    } else {
    }
    return
  }
  func.func @transform_0(%arg0: i32, %arg1: i32) -> (i32, i32) {
    %c0_i32 = arith.constant 0 : i32
    %c0_i32_0 = arith.constant 0 : i32
    return %arg0, %c0_i32 : i32, i32
  }
  func.func @transform_1(%arg0: i32, %arg1: i32) -> (i32, i32) {
    %c0_i32 = arith.constant 0 : i32
    %c0_i32_0 = arith.constant 0 : i32
    return %c0_i32, %arg1 : i32, i32
  }
  func.func @transform_2(%arg0: i32, %arg1: i32) -> (i32, i32) {
    %c0_i32 = arith.constant 0 : i32
    %c0_i32_0 = arith.constant 0 : i32
    return %c0_i32, %arg1 : i32, i32
  }
  func.func @transform_3(%arg0: i32, %arg1: i32) -> (i32, i32) {
    %c0_i32 = arith.constant 0 : i32
    %c0_i32_0 = arith.constant 0 : i32
    return %arg1, %c0_i32 : i32, i32
  }
  func.func @transform_4(%arg0: i32, %arg1: i32) -> (i32, i32) {
    %c0_i32 = arith.constant 0 : i32
    %c0_i32_0 = arith.constant 0 : i32
    return %arg0, %c0_i32 : i32, i32
  }
}

</mosaic_0001>

<llo_original>
// kernel: jiutian_top2_mlp.1
$region0: #{jiutian_top2_mlp.1}
  #allocation0 [shape = 'u32[]', space=smem, size = 0x4, offset = 0x4, fixed_abs, tag = 'smem constant byte address 0x4 - core index']
  #allocation1 [shape = 'u32[72,128]{1,0:T(1,128)}', space=vmem, size = 0x9000, scoped, tag = 'internal scratch']
  #allocation2 [shape = 'f32[8,128]{1,0:T(8,128)}', space=vmem, size = 0x1000, scoped, tag = 'scratch operand']
  %s0 = inlined_call_operand.hbm [shape: f32[8,128], index: 0, kind: input, shape index: {}]
  %s1 = inlined_call_operand.hbm [shape: f32[128,256], index: 1, kind: input, shape index: {}]
  %s2 = inlined_call_operand.hbm [shape: f32[128,256], index: 2, kind: input, shape index: {}]
  %s3 = inlined_call_operand.hbm [shape: f32[256,128], index: 3, kind: input, shape index: {}]
  %s4 = inlined_call_operand.hbm [shape: f32[8,128], index: 4, kind: output, shape index: {}]
  %s5 = sld [smem:[#allocation0]]
  $region50: #{jiutian_top2_mlp.1} parent=0
    _
  %s7 = ssub.s32 1, %s5
  %s8 = scalar_select 0, %s7, %s5
  $region1: #{jiutian_top2_mlp.1} parent=0
    #allocation3 [shape = 'u8[4096]{0}', space=vmem, size = 0x1000, scoped, tag = 'input window, operand 0, single buffered']
    #allocation4 [shape = 's32[1]{0}', space=sflag, size = 0x4, scoped, tag = 'scoped memory for jiutian_top2_mlp.1']
    #allocation5 [shape = 's32[1]{0}', space=sflag, size = 0x4, scoped, tag = 'scoped memory for jiutian_top2_mlp.1']
    #allocation6 [shape = 'u8[131072]{0}', space=vmem, size = 0x20000, scoped, tag = 'input window, operand 1, single buffered']
    #allocation7 [shape = 's32[1]{0}', space=sflag, size = 0x4, scoped, tag = 'scoped memory for jiutian_top2_mlp.1']
    #allocation8 [shape = 'u8[131072]{0}', space=vmem, size = 0x20000, scoped, tag = 'input window, operand 2, single buffered']
    #allocation9 [shape = 'u8[131072]{0}', space=vmem, size = 0x20000, scoped, tag = 'input window, operand 3, single buffered']
    #allocation10 [shape = 's32[1]{0}', space=sflag, size = 0x4, scoped, tag = 'scoped memory for jiutian_top2_mlp.1']
    #allocation11 [shape = 'u8[4096]{0}', space=vmem, size = 0x1000, scoped, tag = 'output window, operand 0, single buffered']
    %9 = vsyncpa [#allocation4], 0
    %10 = vsyncpa [#allocation7], 0
    %11 = vsyncpa [#allocation10], 0
    %12 = vsyncpa [#allocation5], 0
    // Predicated region
    $region2: #{jiutian_top2_mlp.1} parent=1 // pred_check
      _
    $region3: #{jiutian_top2_mlp.1} parent=1 // pred_check_branch
      %14 = sbr.rel (0) target = $region5
    $region4: #{jiutian_top2_mlp.1} parent=1 // pred_region
      %16 = vsyncadd [#allocation4], 0
      %s18 = sshll.u32 %s0, 4
      %s19 = int_to_ptr.hbm [resolvable:$true] %s18
      %s20 = sshll.u32 [#allocation3], 4
      %s21 = int_to_ptr.vmem [resolvable:$true] %s20
      %23 = dma.hbm_to_vmem [thread:$0]  %s19, 128, %s21, [#allocation4]
    $region5: #{jiutian_top2_mlp.1} parent=1 // pred_fallthru
      _
    // Predicated region
    $region6: #{jiutian_top2_mlp.1} parent=1 // pred_check
      _
    $region7: #{jiutian_top2_mlp.1} parent=1 // pred_check_branch
      %25 = sbr.rel (0) target = $region9
    $region8: #{jiutian_top2_mlp.1} parent=1 // pred_region
      %27 = vsyncadd [#allocation7], 0
      %s28 = sshll.u32 %s1, 4
      %s29 = int_to_ptr.hbm [resolvable:$true] %s28
      %s30 = sshll.u32 [#allocation6], 4
      %s31 = int_to_ptr.vmem [resolvable:$true] %s30
      %36 = dma.hbm_to_vmem [thread:$0]  %s29, 4096, %s31, [#allocation7], 256, 256, 16
    $region9: #{jiutian_top2_mlp.1} parent=1 // pred_fallthru
      _
    // Predicated region
    $region10: #{jiutian_top2_mlp.1} parent=1 // pred_check
      _
    $region11: #{jiutian_top2_mlp.1} parent=1 // pred_check_branch
      %38 = sbr.rel (0) target = $region13
    $region12: #{jiutian_top2_mlp.1} parent=1 // pred_region
      %40 = vsyncadd [#allocation7], 0
      %s41 = sshll.u32 %s2, 4
      %s42 = int_to_ptr.hbm [resolvable:$true] %s41
      %s43 = sshll.u32 [#allocation8], 4
      %s44 = int_to_ptr.vmem [resolvable:$true] %s43
      %49 = dma.hbm_to_vmem [thread:$0]  %s42, 4096, %s44, [#allocation7], 256, 256, 16
    $region13: #{jiutian_top2_mlp.1} parent=1 // pred_fallthru
      _
    // Predicated region
    $region14: #{jiutian_top2_mlp.1} parent=1 // pred_check
      _
    $region15: #{jiutian_top2_mlp.1} parent=1 // pred_check_branch
      %51 = sbr.rel (0) target = $region17
    $region16: #{jiutian_top2_mlp.1} parent=1 // pred_region
      %53 = vsyncadd [#allocation10], 0
      %s54 = sshll.u32 %s3, 4
      %s55 = int_to_ptr.hbm [resolvable:$true] %s54
      %s56 = sshll.u32 [#allocation9], 4
      %s57 = int_to_ptr.vmem [resolvable:$true] %s56
      %62 = dma.hbm_to_vmem [thread:$0]  %s55, 4096, %s57, [#allocation10], 128, 128, 8
    $region17: #{jiutian_top2_mlp.1} parent=1 // pred_fallthru
      _
    // Predicated region
    $region18: #{jiutian_top2_mlp.1} parent=1 // pred_check
      _
    $region19: #{jiutian_top2_mlp.1} parent=1 // pred_check_branch
      %64 = sbr.rel (0) target = $region21
    $region20: #{jiutian_top2_mlp.1} parent=1 // pred_region
      %66 = dma.done [#allocation4], 128
    $region21: #{jiutian_top2_mlp.1} parent=1 // pred_fallthru
      _
    // Predicated region
    $region22: #{jiutian_top2_mlp.1} parent=1 // pred_check
      _
    $region23: #{jiutian_top2_mlp.1} parent=1 // pred_check_branch
      %68 = sbr.rel (0) target = $region25
    $region24: #{jiutian_top2_mlp.1} parent=1 // pred_region
      %70 = dma.done [#allocation7], 4096
    $region25: #{jiutian_top2_mlp.1} parent=1 // pred_fallthru
      _
    // Predicated region
    $region26: #{jiutian_top2_mlp.1} parent=1 // pred_check
      _
    $region27: #{jiutian_top2_mlp.1} parent=1 // pred_check_branch
      %72 = sbr.rel (0) target = $region29
    $region28: #{jiutian_top2_mlp.1} parent=1 // pred_region
      %74 = dma.done [#allocation7], 4096
    $region29: #{jiutian_top2_mlp.1} parent=1 // pred_fallthru
      _
    // Predicated region
    $region30: #{jiutian_top2_mlp.1} parent=1 // pred_check
      _
    $region31: #{jiutian_top2_mlp.1} parent=1 // pred_check_branch
      %76 = sbr.rel (0) target = $region33
    $region32: #{jiutian_top2_mlp.1} parent=1 // pred_region
      %78 = dma.done [#allocation10], 4096
    $region33: #{jiutian_top2_mlp.1} parent=1 // pred_fallthru
      _
    %p79 = scmp.eq.s32.totalorder 0, 0
    // Predicated region
    $region34: #{jiutian_top2_mlp.1} parent=1 // pred_check
      %p80 = pneg %p79
    $region35: #{jiutian_top2_mlp.1} parent=1 // pred_check_branch
      %82 = sbr.rel (%p80) target = $region37
    $region36: #{jiutian_top2_mlp.1} parent=1 // pred_region
      %83 = vst [vmem:[#allocation2] sm:$0xff] 0.0
    $region37: #{jiutian_top2_mlp.1} parent=1 // pred_fallthru
      _
    %v84 = vld [vmem:[#allocation3] sm:$0xff]
    %v85 = vld [vmem:[#allocation6] sm:$0xff]
    %v86 = vld [vmem:[#allocation6 + $0x8] sm:$0xff]
    %v87 = vld [vmem:[#allocation6 + $0x10] sm:$0xff]
    %v88 = vld [vmem:[#allocation6 + $0x18] sm:$0xff]
    %v89 = vld [vmem:[#allocation6 + $0x20] sm:$0xff]
    %v90 = vld [vmem:[#allocation6 + $0x28] sm:$0xff]
    %v91 = vld [vmem:[#allocation6 + $0x30] sm:$0xff]
    %v92 = vld [vmem:[#allocation6 + $0x38] sm:$0xff]
    %v93 = vld [vmem:[#allocation6 + $0x40] sm:$0xff]
    %v94 = vld [vmem:[#allocation6 + $0x48] sm:$0xff]
    %v95 = vld [vmem:[#allocation6 + $0x50] sm:$0xff]
    %v96 = vld [vmem:[#allocation6 + $0x58] sm:$0xff]
    %v97 = vld [vmem:[#allocation6 + $0x60] sm:$0xff]
    %v98 = vld [vmem:[#allocation6 + $0x68] sm:$0xff]
    %v99 = vld [vmem:[#allocation6 + $0x70] sm:$0xff]
    %v100 = vld [vmem:[#allocation6 + $0x78] sm:$0xff]
    %v101 = vld [vmem:[#allocation6 + $0x80] sm:$0xff]
    %v102 = vld [vmem:[#allocation6 + $0x88] sm:$0xff]
    %v103 = vld [vmem:[#allocation6 + $0x90] sm:$0xff]
    %v104 = vld [vmem:[#allocation6 + $0x98] sm:$0xff]
    %v105 = vld [vmem:[#allocation6 + $0xa0] sm:$0xff]
    %v106 = vld [vmem:[#allocation6 + $0xa8] sm:$0xff]
    %v107 = vld [vmem:[#allocation6 + $0xb0] sm:$0xff]
    %v108 = vld [vmem:[#allocation6 + $0xb8] sm:$0xff]
    %v109 = vld [vmem:[#allocation6 + $0xc0] sm:$0xff]
    %v110 = vld [vmem:[#allocation6 + $0xc8] sm:$0xff]
    %v111 = vld [vmem:[#allocation6 + $0xd0] sm:$0xff]
    %v112 = vld [vmem:[#allocation6 + $0xd8] sm:$0xff]
    %v113 = vld [vmem:[#allocation6 + $0xe0] sm:$0xff]
    %v114 = vld [vmem:[#allocation6 + $0xe8] sm:$0xff]
    %v115 = vld [vmem:[#allocation6 + $0xf0] sm:$0xff]
    %v116 = vld [vmem:[#allocation6 + $0xf8] sm:$0xff]
    %117 = vmatpush.msra.mxu0 %v115
    %118 = vmatpush.msra.mxu0 %v113
    %119 = vmatpush.msra.mxu0 %v111
    %120 = vmatpush.msra.mxu0 %v109
    %121 = vmatpush.msra.mxu0 %v107
    %122 = vmatpush.msra.mxu0 %v105
    %123 = vmatpush.msra.mxu0 %v103
    %124 = vmatpush.msra.mxu0 %v101
    %125 = vmatpush.msra.mxu0 %v99
    %126 = vmatpush.msra.mxu0 %v97
    %127 = vmatpush.msra.mxu0 %v95
    %128 = vmatpush.msra.mxu0 %v93
    %129 = vmatpush.msra.mxu0 %v91
    %130 = vmatpush.msra.mxu0 %v89
    %131 = vmatpush.msra.mxu0 %v87
    %132 = vmatpush.msra.mxu0 %v85
    %133 = vmatmul.f32.gmra.mxu0 %v84
    %v134 = vpop.f32.mrf.mxu0
    %v135 = vadd.f32 0.0, %v134
    %136 = vdwg.mxu0
    %137 = vmatpush.msra.mxu0 %v116
    %138 = vmatpush.msra.mxu0 %v114
    %139 = vmatpush.msra.mxu0 %v112
    %140 = vmatpush.msra.mxu0 %v110
    %141 = vmatpush.msra.mxu0 %v108
    %142 = vmatpush.msra.mxu0 %v106
    %143 = vmatpush.msra.mxu0 %v104
    %144 = vmatpush.msra.mxu0 %v102
    %145 = vmatpush.msra.mxu0 %v100
    %146 = vmatpush.msra.mxu0 %v98
    %147 = vmatpush.msra.mxu0 %v96
    %148 = vmatpush.msra.mxu0 %v94
    %149 = vmatpush.msra.mxu0 %v92
    %150 = vmatpush.msra.mxu0 %v90
    %151 = vmatpush.msra.mxu0 %v88
    %152 = vmatpush.msra.mxu0 %v86
    %153 = vmatmul.f32.gmra.mxu0 %v84
    %v154 = vpop.f32.mrf.mxu0
    %v155 = vadd.f32 0.0, %v154
    %156 = vdwg.mxu0
    %v157 = vld [vmem:[#allocation8] sm:$0xff]
    %v158 = vld [vmem:[#allocation8 + $0x8] sm:$0xff]
    %v159 = vld [vmem:[#allocation8 + $0x10] sm:$0xff]
    %v160 = vld [vmem:[#allocation8 + $0x18] sm:$0xff]
    %v161 = vld [vmem:[#allocation8 + $0x20] sm:$0xff]
    %v162 = vld [vmem:[#allocation8 + $0x28] sm:$0xff]
    %v163 = vld [vmem:[#allocation8 + $0x30] sm:$0xff]
    %v164 = vld [vmem:[#allocation8 + $0x38] sm:$0xff]
    %v165 = vld [vmem:[#allocation8 + $0x40] sm:$0xff]
    %v166 = vld [vmem:[#allocation8 + $0x48] sm:$0xff]
    %v167 = vld [vmem:[#allocation8 + $0x50] sm:$0xff]
    %v168 = vld [vmem:[#allocation8 + $0x58] sm:$0xff]
    %v169 = vld [vmem:[#allocation8 + $0x60] sm:$0xff]
    %v170 = vld [vmem:[#allocation8 + $0x68] sm:$0xff]
    %v171 = vld [vmem:[#allocation8 + $0x70] sm:$0xff]
    %v172 = vld [vmem:[#allocation8 + $0x78] sm:$0xff]
    %v173 = vld [vmem:[#allocation8 + $0x80] sm:$0xff]
    %v174 = vld [vmem:[#allocation8 + $0x88] sm:$0xff]
    %v175 = vld [vmem:[#allocation8 + $0x90] sm:$0xff]
    %v176 = vld [vmem:[#allocation8 + $0x98] sm:$0xff]
    %v177 = vld [vmem:[#allocation8 + $0xa0] sm:$0xff]
    %v178 = vld [vmem:[#allocation8 + $0xa8] sm:$0xff]
    %v179 = vld [vmem:[#allocation8 + $0xb0] sm:$0xff]
    %v180 = vld [vmem:[#allocation8 + $0xb8] sm:$0xff]
    %v181 = vld [vmem:[#allocation8 + $0xc0] sm:$0xff]
    %v182 = vld [vmem:[#allocation8 + $0xc8] sm:$0xff]
    %v183 = vld [vmem:[#allocation8 + $0xd0] sm:$0xff]
    %v184 = vld [vmem:[#allocation8 + $0xd8] sm:$0xff]
    %v185 = vld [vmem:[#allocation8 + $0xe0] sm:$0xff]
    %v186 = vld [vmem:[#allocation8 + $0xe8] sm:$0xff]
    %v187 = vld [vmem:[#allocation8 + $0xf0] sm:$0xff]
    %v188 = vld [vmem:[#allocation8 + $0xf8] sm:$0xff]
    %189 = vmatpush.msra.mxu0 %v187
    %190 = vmatpush.msra.mxu0 %v185
    %191 = vmatpush.msra.mxu0 %v183
    %192 = vmatpush.msra.mxu0 %v181
    %193 = vmatpush.msra.mxu0 %v179
    %194 = vmatpush.msra.mxu0 %v177
    %195 = vmatpush.msra.mxu0 %v175
    %196 = vmatpush.msra.mxu0 %v173
    %197 = vmatpush.msra.mxu0 %v171
    %198 = vmatpush.msra.mxu0 %v169
    %199 = vmatpush.msra.mxu0 %v167
    %200 = vmatpush.msra.mxu0 %v165
    %201 = vmatpush.msra.mxu0 %v163
    %202 = vmatpush.msra.mxu0 %v161
    %203 = vmatpush.msra.mxu0 %v159
    %204 = vmatpush.msra.mxu0 %v157
    %205 = vmatmul.f32.gmra.mxu0 %v84
    %v206 = vpop.f32.mrf.mxu0
    %v207 = vadd.f32 0.0, %v206
    %208 = vdwg.mxu0
    %209 = vmatpush.msra.mxu0 %v188
    %210 = vmatpush.msra.mxu0 %v186
    %211 = vmatpush.msra.mxu0 %v184
    %212 = vmatpush.msra.mxu0 %v182
    %213 = vmatpush.msra.mxu0 %v180
    %214 = vmatpush.msra.mxu0 %v178
    %215 = vmatpush.msra.mxu0 %v176
    %216 = vmatpush.msra.mxu0 %v174
    %217 = vmatpush.msra.mxu0 %v172
    %218 = vmatpush.msra.mxu0 %v170
    %219 = vmatpush.msra.mxu0 %v168
    %220 = vmatpush.msra.mxu0 %v166
    %221 = vmatpush.msra.mxu0 %v164
    %222 = vmatpush.msra.mxu0 %v162
    %223 = vmatpush.msra.mxu0 %v160
    %224 = vmatpush.msra.mxu0 %v158
    %225 = vmatmul.f32.gmra.mxu0 %v84
    %v226 = vpop.f32.mrf.mxu0
    %v227 = vadd.f32 0.0, %v226
    %228 = vdwg.mxu0
    %v229 = vxor.u32 %v135, 2147483648
    %v230 = vxor.u32 %v155, 2147483648
    %v231 = vmul.f32 %v229, 1.442695
    %v232 = vpow.pop %v231
    %v233 = vmul.f32 %v230, 1.442695
    %v234 = vpow.pop %v233
    %v235 = vadd.f32 %v232, 1.0
    %v236 = vadd.f32 %v234, 1.0
    %v237 = vrcp.pop %v235
    %v238 = vmul.f32 %v235, %v237
    %v239 = vsub.f32 1.0, %v238
    %v240 = vmul.f32 %v237, %v239
    %v241 = vadd.f32 %v237, %v240
    %vm242 = vweird.f32 %v235
    %vm243 = vweird.f32 %v237
    %vm244 = vmor %vm242, %vm243
    %v245 = vsel %vm244, %v237, %v241
    %v246 = vand.u32 2147483647, %v235
    %vm247 = vcmp.eq.f32.partialorder %v246, 8.507059e+37
    %v248 = vand.u32 %v235, 2147483648
    %v249 = vor.u32 1.1754944e-38, %v248
    %v250 = vsel %vm247, %v249, %v245
    %v251 = vmul.f32 1.0, %v250
    %v252 = vrcp.pop %v236
    %v253 = vmul.f32 %v236, %v252
    %v254 = vsub.f32 1.0, %v253
    %v255 = vmul.f32 %v252, %v254
    %v256 = vadd.f32 %v252, %v255
    %vm257 = vweird.f32 %v236
    %vm258 = vweird.f32 %v252
    %vm259 = vmor %vm257, %vm258
    %v260 = vsel %vm259, %v252, %v256
    %v261 = vand.u32 2147483647, %v236
    %vm262 = vcmp.eq.f32.partialorder %v261, 8.507059e+37
    %v263 = vand.u32 %v236, 2147483648
    %v264 = vor.u32 1.1754944e-38, %v263
    %v265 = vsel %vm262, %v264, %v260
    %v266 = vmul.f32 1.0, %v265
    %v267 = vmul.f32 %v135, %v251
    %v268 = vmul.f32 %v155, %v266
    %v269 = vmul.f32 %v267, %v207
    %v270 = vmul.f32 %v268, %v227
    %v271 = vld [vmem:[#allocation2] sm:$0xff]
    %v272 = vld [vmem:[#allocation9] sm:$0xff]
    %v273 = vld [vmem:[#allocation9 + $0x8] sm:$0xff]
    %v274 = vld [vmem:[#allocation9 + $0x10] sm:$0xff]
    %v275 = vld [vmem:[#allocation9 + $0x18] sm:$0xff]
    %v276 = vld [vmem:[#allocation9 + $0x20] sm:$0xff]
    %v277 = vld [vmem:[#allocation9 + $0x28] sm:$0xff]
    %v278 = vld [vmem:[#allocation9 + $0x30] sm:$0xff]
    %v279 = vld [vmem:[#allocation9 + $0x38] sm:$0xff]
    %v280 = vld [vmem:[#allocation9 + $0x40] sm:$0xff]
    %v281 = vld [vmem:[#allocation9 + $0x48] sm:$0xff]
    %v282 = vld [vmem:[#allocation9 + $0x50] sm:$0xff]
    %v283 = vld [vmem:[#allocation9 + $0x58] sm:$0xff]
    %v284 = vld [vmem:[#allocation9 + $0x60] sm:$0xff]
    %v285 = vld [vmem:[#allocation9 + $0x68] sm:$0xff]
    %v286 = vld [vmem:[#allocation9 + $0x70] sm:$0xff]
    %v287 = vld [vmem:[#allocation9 + $0x78] sm:$0xff]
    %v288 = vld [vmem:[#allocation9 + $0x80] sm:$0xff]
    %v289 = vld [vmem:[#allocation9 + $0x88] sm:$0xff]
    %v290 = vld [vmem:[#allocation9 + $0x90] sm:$0xff]
    %v291 = vld [vmem:[#allocation9 + $0x98] sm:$0xff]
    %v292 = vld [vmem:[#allocation9 + $0xa0] sm:$0xff]
    %v293 = vld [vmem:[#allocation9 + $0xa8] sm:$0xff]
    %v294 = vld [vmem:[#allocation9 + $0xb0] sm:$0xff]
    %v295 = vld [vmem:[#allocation9 + $0xb8] sm:$0xff]
    %v296 = vld [vmem:[#allocation9 + $0xc0] sm:$0xff]
    %v297 = vld [vmem:[#allocation9 + $0xc8] sm:$0xff]
    %v298 = vld [vmem:[#allocation9 + $0xd0] sm:$0xff]
    %v299 = vld [vmem:[#allocation9 + $0xd8] sm:$0xff]
    %v300 = vld [vmem:[#allocation9 + $0xe0] sm:$0xff]
    %v301 = vld [vmem:[#allocation9 + $0xe8] sm:$0xff]
    %v302 = vld [vmem:[#allocation9 + $0xf0] sm:$0xff]
    %v303 = vld [vmem:[#allocation9 + $0xf8] sm:$0xff]
    %304 = vmatpush.msra.mxu0 %v287
    %305 = vmatpush.msra.mxu0 %v286
    %306 = vmatpush.msra.mxu0 %v285
    %307 = vmatpush.msra.mxu0 %v284
    %308 = vmatpush.msra.mxu0 %v283
    %309 = vmatpush.msra.mxu0 %v282
    %310 = vmatpush.msra.mxu0 %v281
    %311 = vmatpush.msra.mxu0 %v280
    %312 = vmatpush.msra.mxu0 %v279
    %313 = vmatpush.msra.mxu0 %v278
    %314 = vmatpush.msra.mxu0 %v277
    %315 = vmatpush.msra.mxu0 %v276
    %316 = vmatpush.msra.mxu0 %v275
    %317 = vmatpush.msra.mxu0 %v274
    %318 = vmatpush.msra.mxu0 %v273
    %319 = vmatpush.msra.mxu0 %v272
    %320 = vmatmul.f32.gmra.mxu0 %v269
    %v321 = vpop.f32.mrf.mxu0
    %v322 = vadd.f32 0.0, %v321
    %323 = vdwg.mxu0
    %324 = vmatpush.msra.mxu0 %v303
    %325 = vmatpush.msra.mxu0 %v302
    %326 = vmatpush.msra.mxu0 %v301
    %327 = vmatpush.msra.mxu0 %v300
    %328 = vmatpush.msra.mxu0 %v299
    %329 = vmatpush.msra.mxu0 %v298
    %330 = vmatpush.msra.mxu0 %v297
    %331 = vmatpush.msra.mxu0 %v296
    %332 = vmatpush.msra.mxu0 %v295
    %333 = vmatpush.msra.mxu0 %v294
    %334 = vmatpush.msra.mxu0 %v293
    %335 = vmatpush.msra.mxu0 %v292
    %336 = vmatpush.msra.mxu0 %v291
    %337 = vmatpush.msra.mxu0 %v290
    %338 = vmatpush.msra.mxu0 %v289
    %339 = vmatpush.msra.mxu0 %v288
    %340 = vmatmul.f32.gmra.mxu0 %v270
    %v341 = vpop.f32.mrf.mxu0
    %v342 = vadd.f32 %v322, %v341
    %343 = vdwg.mxu0
    %v344 = vadd.f32 %v271, %v342
    %345 = vst [vmem:[#allocation2] sm:$0xff] %v344
    // Predicated region
    $region38: #{jiutian_top2_mlp.1} parent=1 // pred_check
      %p346 = pneg %p79
    $region39: #{jiutian_top2_mlp.1} parent=1 // pred_check_branch
      %348 = sbr.rel (%p346) target = $region41
    $region40: #{jiutian_top2_mlp.1} parent=1 // pred_region
      %v349 = vld [vmem:[#allocation2] sm:$0xff]
      %350 = vst [vmem:[#allocation11] sm:$0xff] %v349
    $region41: #{jiutian_top2_mlp.1} parent=1 // pred_fallthru
      _
    // Predicated region
    $region42: #{jiutian_top2_mlp.1} parent=1 // pred_check
      _
    $region43: #{jiutian_top2_mlp.1} parent=1 // pred_check_branch
      %352 = sbr.rel (0) target = $region45
    $region44: #{jiutian_top2_mlp.1} parent=1 // pred_region
      %354 = vsyncadd [#allocation5], 0
      %s356 = sshll.u32 [#allocation11], 4
      %s357 = int_to_ptr.vmem [resolvable:$true] %s356
      %s358 = sshll.u32 %s4, 4
      %s359 = int_to_ptr.hbm [resolvable:$true] %s358
      %361 = dma.vmem_to_hbm [thread:$0]  %s357, 128, %s359, [#allocation5]
    $region45: #{jiutian_top2_mlp.1} parent=1 // pred_fallthru
      _
    // Predicated region
    $region46: #{jiutian_top2_mlp.1} parent=1 // pred_check
      _
    $region47: #{jiutian_top2_mlp.1} parent=1 // pred_check_branch
      %363 = sbr.rel (0) target = $region49
    $region48: #{jiutian_top2_mlp.1} parent=1 // pred_region
      %365 = dma.done [#allocation5], 128
    $region49: #{jiutian_top2_mlp.1} parent=1 // pred_fallthru
      _
    %366 = vsyncpa [#allocation4], 1
    %367 = vsyncpa [#allocation7], 1
    %368 = vsyncpa [#allocation10], 1
    %369 = vsyncpa [#allocation5], 1

</llo_original>
